<compile_context>
chip_gen: v7x
topology: tpu7x:2x2x1
jax: 0.10.0
libtpu: 0.0.40
codegen_flags: <defaults>
</compile_context>

<pallas_src>
import functools
import math

import jax
import jax.numpy as jnp
from jax.experimental import pallas as pl
from jax.experimental.pallas import tpu as pltpu


# ~2 MiB per pipelined block (x2 buffers x (in+out) ~= 8 MiB of VMEM), leaves
# plenty of headroom on all generations (v7x has only 64 MiB physical VMEM).
_TILE_TARGET_BYTES = 2 * 1024 * 1024
_VMEM_LIMIT_BYTES = 32 * 1024 * 1024   # explicitly raise v5e's 16 MiB default


# ----------------------------------------------------------------------------
# Kernels
# ----------------------------------------------------------------------------
def _ln_cl_kernel(x_ref, w_ref, b_ref, o_ref, *, eps, c, k):
    """channels_last LayerNorm on a (rows_tile, k*c) lane-dense slab.

    k == 1: one original row per slab row, reduce over the lane axis.
    k > 1 : each slab row packs k original rows (segments of width c); the
            per-segment sums / broadcasts run on the MXU via a one-hot map.
    """
    x = x_ref[...].astype(jnp.float32)          # (rows_tile, k*c)
    w = w_ref[...].astype(jnp.float32)          # (1, k*c)
    b = b_ref[...].astype(jnp.float32)
    inv_c = jnp.float32(1.0 / c)

    if k == 1:
        s1 = jnp.sum(x, axis=-1, keepdims=True)
        s2 = jnp.sum(x * x, axis=-1, keepdims=True)
        mean = s1 * inv_c
        var = jnp.maximum(s2 * inv_c - mean * mean, 0.0)
        inv = jax.lax.rsqrt(var + eps)
    else:
        kc = k * c
        hi = jax.lax.Precision.HIGHEST
        # One-hot segment map E (kc, k): E[l, g] = 1 iff lane l belongs to seg g.
        lane_seg = jax.lax.broadcasted_iota(jnp.int32, (kc, k), 0) // c
        col_id = jax.lax.broadcasted_iota(jnp.int32, (kc, k), 1)
        seg_map = (lane_seg == col_id).astype(jnp.float32)            # (kc, k)
        # Its transpose, built directly (avoids an in-kernel transpose).
        seg_t = jax.lax.broadcasted_iota(jnp.int32, (k, kc), 1) // c
        row_t = jax.lax.broadcasted_iota(jnp.int32, (k, kc), 0)
        seg_map_t = (seg_t == row_t).astype(jnp.float32)              # (k, kc)

        s1 = jnp.dot(x, seg_map, precision=hi,
                     preferred_element_type=jnp.float32)              # (rows, k)
        s2 = jnp.dot(x * x, seg_map, precision=hi,
                     preferred_element_type=jnp.float32)              # (rows, k)
        mean_seg = s1 * inv_c
        var_seg = jnp.maximum(s2 * inv_c - mean_seg * mean_seg, 0.0)
        inv_seg = jax.lax.rsqrt(var_seg + eps)
        # Broadcast per-segment stats back to all lanes of the segment (MXU).
        mean = jnp.dot(mean_seg, seg_map_t, precision=hi,
                       preferred_element_type=jnp.float32)            # (rows, kc)
        inv = jnp.dot(inv_seg, seg_map_t, precision=hi,
                      preferred_element_type=jnp.float32)             # (rows, kc)

    y = (x - mean) * inv * w + b
    o_ref[...] = y.astype(o_ref.dtype)


def _ln_cf_kernel(x_ref, w_ref, b_ref, o_ref, *, eps, c):
    """channels_first LayerNorm on a (bt, C, spatial_tile) slab.

    Channels sit on the sublane axis, spatial on the (lane-dense) lane axis,
    so no NCHW<->NHWC transposes are needed in the wrapper.
    """
    x = x_ref[...].astype(jnp.float32)          # (bt, C, st)
    w = w_ref[...].astype(jnp.float32)          # (1, C, 1)
    b = b_ref[...].astype(jnp.float32)
    inv_c = jnp.float32(1.0 / c)

    s1 = jnp.sum(x, axis=1, keepdims=True)      # (bt, 1, st)  sublane reduce
    s2 = jnp.sum(x * x, axis=1, keepdims=True)
    mean = s1 * inv_c
    var = jnp.maximum(s2 * inv_c - mean * mean, 0.0)
    inv = jax.lax.rsqrt(var + eps)

    y = (x - mean) * inv * w + b
    o_ref[...] = y.astype(o_ref.dtype)


# ----------------------------------------------------------------------------
# Tile sizing
# ----------------------------------------------------------------------------
def _pick_row_tile(rows, width, itemsize):
    per_row = max(1, width * itemsize)
    tile = _TILE_TARGET_BYTES // per_row
    tile = max(8, min(tile, 4096))
    tile = (tile // 8) * 8
    if rows <= tile:
        return rows                     # single full-extent block (always legal)
    return tile


def _pick_spatial_tile(spatial, c, itemsize):
    per_col = max(1, c * itemsize)
    tile = _TILE_TARGET_BYTES // per_col
    tile = max(128, min(tile, 16384))
    tile = (tile // 128) * 128
    if spatial <= tile:
        return spatial                  # single full-extent block
    return tile


# ----------------------------------------------------------------------------
# Wrappers
# ----------------------------------------------------------------------------
@functools.partial(jax.jit, static_argnames=("eps",))
def _layernorm_channels_last(x, weight, bias, eps):
    C = x.shape[-1]
    lead = x.shape[:-1]
    rows = 1
    for d in lead:
        rows *= d
    x2d = x.reshape(rows, C)
    itemsize = jnp.dtype(x.dtype).itemsize

    # Lane-packing factor for small / non-128-multiple C.
    k = 1
    if C % 128 != 0:
        k_cand = 128 // math.gcd(C, 128)
        if k_cand > 1 and k_cand * C <= 4096 and rows % k_cand == 0:
            k = k_cand

    if k > 1:
        x2d = x2d.reshape(rows // k, k * C)        # free reshape in HBM
        w_in = jnp.tile(weight.reshape(1, C), (1, k))
        b_in = jnp.tile(bias.reshape(1, C), (1, k))
    else:
        w_in = weight.reshape(1, C)
        b_in = bias.reshape(1, C)

    R, W = x2d.shape
    tile = _pick_row_tile(R, W, itemsize)
    grid = (pl.cdiv(R, tile),)

    out = pl.pallas_call(
        functools.partial(_ln_cl_kernel, eps=eps, c=C, k=k),
        out_shape=jax.ShapeDtypeStruct((R, W), x.dtype),
        grid_spec=pltpu.PrefetchScalarGridSpec(
            num_scalar_prefetch=0,
            grid=grid,
            in_specs=[
                pl.BlockSpec((tile, W), lambda i: (i, 0)),
                pl.BlockSpec((1, W), lambda i: (0, 0)),
                pl.BlockSpec((1, W), lambda i: (0, 0)),
            ],
            out_specs=pl.BlockSpec((tile, W), lambda i: (i, 0)),
        ),
        compiler_params=pltpu.CompilerParams(
            dimension_semantics=("parallel",),
            vmem_limit_bytes=_VMEM_LIMIT_BYTES),
    )(x2d, w_in, b_in)
    return out.reshape(*lead, C)


@functools.partial(jax.jit, static_argnames=("eps",))
def _layernorm_channels_first(x, weight, bias, eps):
    B, C, H, W = x.shape
    S = H * W
    x3 = x.reshape(B, C, S)                        # free reshape, no transpose
    itemsize = jnp.dtype(x.dtype).itemsize

    st = _pick_spatial_tile(S, C, itemsize)
    bt = 1
    if st == S:
        block_bytes = max(1, C * S * itemsize)
        bt_max = int(max(1, min(B, _TILE_TARGET_BYTES // block_bytes)))
        for cand in range(bt_max, 0, -1):          # pick a divisor of B
            if B % cand == 0:
                bt = cand
                break

    w3 = weight.reshape(1, C, 1)
    b3 = bias.reshape(1, C, 1)
    grid = (pl.cdiv(B, bt), pl.cdiv(S, st))

    out = pl.pallas_call(
        functools.partial(_ln_cf_kernel, eps=eps, c=C),
        out_shape=jax.ShapeDtypeStruct((B, C, S), x.dtype),
        grid_spec=pltpu.PrefetchScalarGridSpec(
            num_scalar_prefetch=0,
            grid=grid,
            in_specs=[
                pl.BlockSpec((bt, C, st), lambda bi, si: (bi, 0, si)),
                pl.BlockSpec((1, C, 1), lambda bi, si: (0, 0, 0)),
                pl.BlockSpec((1, C, 1), lambda bi, si: (0, 0, 0)),
            ],
            out_specs=pl.BlockSpec((bt, C, st), lambda bi, si: (bi, 0, si)),
        ),
        compiler_params=pltpu.CompilerParams(
            dimension_semantics=("parallel", "parallel"),
            vmem_limit_bytes=_VMEM_LIMIT_BYTES),
    )(x3, w3, b3)
    return out.reshape(B, C, H, W)


class PallasLayerNorm:
    """JAX/Pallas port of the ConvNeXt LayerNorm module."""

    def __init__(self, normalized_shape, eps=1e-6, data_format="channels_last"):
        if data_format not in ("channels_last", "channels_first"):
            raise NotImplementedError
        # Same init as nn.Parameter(torch.ones/zeros(normalized_shape)).
        self.weight = jnp.ones((normalized_shape,), dtype=jnp.float32)
        self.bias = jnp.zeros((normalized_shape,), dtype=jnp.float32)
        self.eps = float(eps)
        self.data_format = data_format
        self.normalized_shape = (normalized_shape,)

    def __call__(self, x):
        C = self.normalized_shape[0]
        if self.data_format == "channels_last":
            assert x.shape[-1] == C
            return _layernorm_channels_last(x, self.weight, self.bias, self.eps)
        else:
            assert x.ndim == 4 and x.shape[1] == C
            return _layernorm_channels_first(x, self.weight, self.bias, self.eps)


# ----------------------------------------------------------------------------
# References (match the PyTorch module semantics)
# ----------------------------------------------------------------------------
def _reference_channels_first(x, w, b, eps):
    u = jnp.mean(x, axis=1, keepdims=True)
    s = jnp.mean((x - u) ** 2, axis=1, keepdims=True)
    xn = (x - u) / jnp.sqrt(s + eps)
    return w[None, :, None, None] * xn + b[None, :, None, None]


def _reference_channels_last(x, w, b, eps):
    u = jnp.mean(x, axis=-1, keepdims=True)
    s = jnp.mean((x - u) ** 2, axis=-1, keepdims=True)
    return (x - u) / jnp.sqrt(s + eps) * w + b


if __name__ == "__main__":
    key = jax.random.PRNGKey(0)
    k1, k2, k3, k4 = jax.random.split(key, 4)
    tol = dict(atol=2e-5, rtol=2e-5)

    # channels_first (NCHW), as used in ConvNeXt stem / downsample layers.
    x_cf = jax.random.normal(k1, (2, 4, 16, 16), dtype=jnp.float32)
    ln_cf = PallasLayerNorm(4, eps=1e-6, data_format="channels_first")
    y_cf = jax.block_until_ready(ln_cf(x_cf))
    ref_cf = _reference_channels_first(x_cf, ln_cf.weight, ln_cf.bias, 1e-6)
    assert y_cf.shape == x_cf.shape and y_cf.dtype == x_cf.dtype
    assert jnp.allclose(y_cf, ref_cf, **tol)

    # channels_last (NHWC), small C -> packed lane-dense path (k=4, width 128).
    x_cl = jax.random.normal(k2, (2, 8, 8, 32), dtype=jnp.float32)
    ln_cl = PallasLayerNorm(32, eps=1e-6, data_format="channels_last")
    y_cl = jax.block_until_ready(ln_cl(x_cl))
    ref_cl = _reference_channels_last(x_cl, ln_cl.weight, ln_cl.bias, 1e-6)
    assert y_cl.shape == x_cl.shape and y_cl.dtype == x_cl.dtype
    assert jnp.allclose(y_cl, ref_cl, **tol)

    # channels_last, C already a multiple of 128 -> plain (k=1) path.
    x_cl2 = jax.random.normal(k3, (2, 4, 4, 128), dtype=jnp.float32)
    ln_cl2 = PallasLayerNorm(128, eps=1e-6, data_format="channels_last")
    y_cl2 = jax.block_until_ready(ln_cl2(x_cl2))
    ref_cl2 = _reference_channels_last(x_cl2, ln_cl2.weight, ln_cl2.bias, 1e-6)
    assert jnp.allclose(y_cl2, ref_cl2, **tol)

    # channels_last, rows not divisible by the packing factor -> fallback path.
    x_cl3 = jax.random.normal(k4, (1, 5, 5, 32), dtype=jnp.float32)
    ln_cl3 = PallasLayerNorm(32, eps=1e-6, data_format="channels_last")
    y_cl3 = jax.block_until_ready(ln_cl3(x_cl3))
    ref_cl3 = _reference_channels_last(x_cl3, ln_cl3.weight, ln_cl3.bias, 1e-6)
    assert jnp.allclose(y_cl3, ref_cl3, **tol)

    print("KERNEL_OK")
</pallas_src>

<mosaic_0001>
module attributes {stable_mosaic.version = 11 : i64} {
  func.func @_ln_cf_kernel(%arg0: i32, %arg1: i32, %arg2: memref<2x4x256xf32, #tpu.memory_space<vmem>>, %arg3: memref<1x4x1xf32, #tpu.memory_space<vmem>>, %arg4: memref<1x4x1xf32, #tpu.memory_space<vmem>>, %arg5: memref<2x4x256xf32, #tpu.memory_space<vmem>>) attributes {dimension_semantics = [#tpu.dimension_semantics<parallel>, #tpu.dimension_semantics<parallel>], iteration_bounds = array<i64: 1, 1>, scalar_prefetch = 0 : i64, scratch_operands = 0 : i64, tpu.core_type = #tpu.core_type<tc>, window_params = [{transform_indices = @transform_0, window_bounds = array<i64: 2, 4, 256>}, {pipeline_mode = #tpu.pipeline_mode<synchronous>, transform_indices = @transform_1, window_bounds = array<i64: 1, 4, 1>}, {pipeline_mode = #tpu.pipeline_mode<synchronous>, transform_indices = @transform_2, window_bounds = array<i64: 1, 4, 1>}, {transform_indices = @transform_3, window_bounds = array<i64: 2, 4, 256>}]} {
    %c0 = arith.constant 0 : index
    %c0_0 = arith.constant 0 : index
    %c0_1 = arith.constant 0 : index
    %0 = vector.load %arg2[%c0, %c0_0, %c0_1] : memref<2x4x256xf32, #tpu.memory_space<vmem>>, vector<2x4x256xf32>
    %c0_2 = arith.constant 0 : index
    %c0_3 = arith.constant 0 : index
    %c0_4 = arith.constant 0 : index
    %1 = vector.load %arg3[%c0_2, %c0_3, %c0_4] : memref<1x4x1xf32, #tpu.memory_space<vmem>>, vector<1x4x1xf32>
    %c0_5 = arith.constant 0 : index
    %c0_6 = arith.constant 0 : index
    %c0_7 = arith.constant 0 : index
    %2 = vector.load %arg4[%c0_5, %c0_6, %c0_7] : memref<1x4x1xf32, #tpu.memory_space<vmem>>, vector<1x4x1xf32>
    %cst = arith.constant dense<0.000000e+00> : vector<2x256xf32>
    %3 = vector.multi_reduction <add>, %0, %cst [1] : vector<2x4x256xf32> to vector<2x256xf32>
    %4 = vector.shape_cast %3 : vector<2x256xf32> to vector<2x1x256xf32>
    %5 = arith.mulf %0, %0 : vector<2x4x256xf32>
    %cst_8 = arith.constant dense<0.000000e+00> : vector<2x256xf32>
    %6 = vector.multi_reduction <add>, %5, %cst_8 [1] : vector<2x4x256xf32> to vector<2x256xf32>
    %7 = vector.shape_cast %6 : vector<2x256xf32> to vector<2x1x256xf32>
    %cst_9 = arith.constant 2.500000e-01 : f32
    %8 = vector.broadcast %cst_9 : f32 to vector<2x1x256xf32>
    %9 = arith.mulf %4, %8 : vector<2x1x256xf32>
    %cst_10 = arith.constant 2.500000e-01 : f32
    %10 = vector.broadcast %cst_10 : f32 to vector<2x1x256xf32>
    %11 = arith.mulf %7, %10 : vector<2x1x256xf32>
    %12 = arith.mulf %9, %9 : vector<2x1x256xf32>
    %13 = arith.subf %11, %12 : vector<2x1x256xf32>
    %cst_11 = arith.constant 0.000000e+00 : f32
    %14 = vector.broadcast %cst_11 : f32 to vector<2x1x256xf32>
    %15 = arith.maximumf %13, %14 : vector<2x1x256xf32>
    %cst_12 = arith.constant 9.99999997E-7 : f32
    %16 = vector.broadcast %cst_12 : f32 to vector<2x1x256xf32>
    %17 = arith.addf %15, %16 : vector<2x1x256xf32>
    %18 = math.rsqrt %17 : vector<2x1x256xf32>
    %19 = vector.broadcast %9 : vector<2x1x256xf32> to vector<2x4x256xf32>
    %20 = arith.subf %0, %19 : vector<2x4x256xf32>
    %21 = vector.broadcast %18 : vector<2x1x256xf32> to vector<2x4x256xf32>
    %22 = arith.mulf %20, %21 : vector<2x4x256xf32>
    %23 = vector.broadcast %1 : vector<1x4x1xf32> to vector<2x4x256xf32>
    %24 = arith.mulf %22, %23 : vector<2x4x256xf32>
    %25 = vector.broadcast %2 : vector<1x4x1xf32> to vector<2x4x256xf32>
    %26 = arith.addf %24, %25 : vector<2x4x256xf32>
    %c0_13 = arith.constant 0 : index
    %c0_14 = arith.constant 0 : index
    %c0_15 = arith.constant 0 : index
    %27 = vector.load %arg5[%c0_13, %c0_14, %c0_15] : memref<2x4x256xf32, #tpu.memory_space<vmem>>, vector<2x4x256xf32>
    tpu.vector_store %arg5[%c0_13, %c0_14, %c0_15], %26 {strides = array<i32>} : memref<2x4x256xf32, #tpu.memory_space<vmem>>, vector<2x4x256xf32>,
    return
  }
  func.func @transform_0(%arg0: i32, %arg1: i32) -> (i32, i32, i32) {
    %c0_i32 = arith.constant 0 : i32
    %c0_i32_0 = arith.constant 0 : i32
    return %arg0, %c0_i32, %arg1 : i32, i32, i32
  }
  func.func @transform_1(%arg0: i32, %arg1: i32) -> (i32, i32, i32) {
    %c0_i32 = arith.constant 0 : i32
    %c0_i32_0 = arith.constant 0 : i32
    %c0_i32_1 = arith.constant 0 : i32
    %c0_i32_2 = arith.constant 0 : i32
    return %c0_i32, %c0_i32_0, %c0_i32_1 : i32, i32, i32
  }
  func.func @transform_2(%arg0: i32, %arg1: i32) -> (i32, i32, i32) {
    %c0_i32 = arith.constant 0 : i32
    %c0_i32_0 = arith.constant 0 : i32
    %c0_i32_1 = arith.constant 0 : i32
    %c0_i32_2 = arith.constant 0 : i32
    return %c0_i32, %c0_i32_0, %c0_i32_1 : i32, i32, i32
  }
  func.func @transform_3(%arg0: i32, %arg1: i32) -> (i32, i32, i32) {
    %c0_i32 = arith.constant 0 : i32
    %c0_i32_0 = arith.constant 0 : i32
    return %arg0, %c0_i32, %arg1 : i32, i32, i32
  }
}

</mosaic_0001>

<llo_original>
// kernel: _layernorm_channels_first.1
$region0: #{_layernorm_channels_first.1}
  #allocation0 [shape = 'u32[]', space=smem, size = 0x4, offset = 0x4, fixed_abs, tag = 'smem constant byte address 0x4 - core index']
  #allocation1 [shape = 'u32[144,128]{1,0:T(1,128)}', space=vmem, size = 0x12000, scoped, tag = 'internal scratch']
  %s0 = inlined_call_operand.vmem [shape: f32[2,4,256], index: 0, kind: input, shape index: {}]
  %s1 = inlined_call_operand.vmem [shape: f32[1,4,1], index: 1, kind: input, shape index: {}]
  %s2 = inlined_call_operand.vmem [shape: f32[1,4,1], index: 2, kind: input, shape index: {}]
  %s3 = inlined_call_operand.vmem [shape: f32[2,4,256], index: 3, kind: output, shape index: {}]
  %s4 = sld [smem:[#allocation0]]
  $region22: #{_layernorm_channels_first.1} parent=0
    _
  %s6 = ssub.s32 1, %s4
  %s7 = scalar_select 0, %s6, %s4
  // Predicated region
  $region2: #{_layernorm_channels_first.1} parent=0 // pred_check
    _
  $region3: #{_layernorm_channels_first.1} parent=0 // pred_check_branch
    %9 = sbr.rel (0) target = $region5
  $region4: #{_layernorm_channels_first.1} parent=0 // pred_region
    _
  $region5: #{_layernorm_channels_first.1} parent=0 // pred_fallthru
    _
  // Predicated region
  $region6: #{_layernorm_channels_first.1} parent=0 // pred_check
    _
  $region7: #{_layernorm_channels_first.1} parent=0 // pred_check_branch
    %11 = sbr.rel (0) target = $region9
  $region8: #{_layernorm_channels_first.1} parent=0 // pred_region
    _
  $region9: #{_layernorm_channels_first.1} parent=0 // pred_fallthru
    _
  // Predicated region
  $region10: #{_layernorm_channels_first.1} parent=0 // pred_check
    _
  $region11: #{_layernorm_channels_first.1} parent=0 // pred_check_branch
    %13 = sbr.rel (0) target = $region13
  $region12: #{_layernorm_channels_first.1} parent=0 // pred_region
    _
  $region13: #{_layernorm_channels_first.1} parent=0 // pred_fallthru
    _
  %v14 = vld [vmem:[%s0] sm:$0xff]
  %v15 = vld [vmem:[%s0 + $0x8] sm:$0xff]
  %v16 = vld [vmem:[%s1] sm:$0xf]
  %v17 = vld [vmem:[%s2] sm:$0xf]
  %v20 = vcombine.high %v14, %v14
  %v21 = vcombine.high %v15, %v15
  %vm24 = vcmask 1043456
  %v25 = vsel %vm24, %v14, 0.0
  %v26 = vrot.slane %v25, 4
  %v27 = vadd.f32 %v25, %v26
  %v28 = vrot.slane %v27, 2
  %v29 = vadd.f32 %v27, %v28
  %v30 = vrot.slane %v29, 1
  %v31 = vadd.f32 %v29, %v30
  %v32 = vsel %vm24, %v20, 0.0
  %v33 = vrot.slane %v32, 4
  %v34 = vadd.f32 %v32, %v33
  %v35 = vrot.slane %v34, 2
  %v36 = vadd.f32 %v34, %v35
  %v37 = vrot.slane %v36, 1
  %v38 = vadd.f32 %v36, %v37
  %v39 = vsel %vm24, %v15, 0.0
  %v40 = vrot.slane %v39, 4
  %v41 = vadd.f32 %v39, %v40
  %v42 = vrot.slane %v41, 2
  %v43 = vadd.f32 %v41, %v42
  %v44 = vrot.slane %v43, 1
  %v45 = vadd.f32 %v43, %v44
  %v46 = vsel %vm24, %v21, 0.0
  %v47 = vrot.slane %v46, 4
  %v48 = vadd.f32 %v46, %v47
  %v49 = vrot.slane %v48, 2
  %v50 = vadd.f32 %v48, %v49
  %v51 = vrot.slane %v50, 1
  %v52 = vadd.f32 %v50, %v51
  %v53 = vmul.f32 %v14, %v14
  %v54 = vmul.f32 %v15, %v15
  %v57 = vcombine.high %v53, %v53
  %v58 = vcombine.high %v54, %v54
  %v61 = vsel %vm24, %v53, 0.0
  %v62 = vrot.slane %v61, 4
  %v63 = vadd.f32 %v61, %v62
  %v64 = vrot.slane %v63, 2
  %v65 = vadd.f32 %v63, %v64
  %v66 = vrot.slane %v65, 1
  %v67 = vadd.f32 %v65, %v66
  %v68 = vsel %vm24, %v57, 0.0
  %v69 = vrot.slane %v68, 4
  %v70 = vadd.f32 %v68, %v69
  %v71 = vrot.slane %v70, 2
  %v72 = vadd.f32 %v70, %v71
  %v73 = vrot.slane %v72, 1
  %v74 = vadd.f32 %v72, %v73
  %v75 = vsel %vm24, %v54, 0.0
  %v76 = vrot.slane %v75, 4
  %v77 = vadd.f32 %v75, %v76
  %v78 = vrot.slane %v77, 2
  %v79 = vadd.f32 %v77, %v78
  %v80 = vrot.slane %v79, 1
  %v81 = vadd.f32 %v79, %v80
  %v82 = vsel %vm24, %v58, 0.0
  %v83 = vrot.slane %v82, 4
  %v84 = vadd.f32 %v82, %v83
  %v85 = vrot.slane %v84, 2
  %v86 = vadd.f32 %v84, %v85
  %v87 = vrot.slane %v86, 1
  %v88 = vadd.f32 %v86, %v87
  %v89 = vmul.f32 %v31, 0.25
  %v90 = vmul.f32 %v38, 0.25
  %v91 = vmul.f32 %v45, 0.25
  %v92 = vmul.f32 %v52, 0.25
  %v93 = vmul.f32 %v67, 0.25
  %v94 = vmul.f32 %v74, 0.25
  %v95 = vmul.f32 %v81, 0.25
  %v96 = vmul.f32 %v88, 0.25
  %v97 = vmul.f32 %v89, %v89
  %v98 = vmul.f32 %v90, %v90
  %v99 = vmul.f32 %v91, %v91
  %v100 = vmul.f32 %v92, %v92
  %v101 = vsub.f32 %v93, %v97
  %v102 = vsub.f32 %v94, %v98
  %v103 = vsub.f32 %v95, %v99
  %v104 = vsub.f32 %v96, %v100
  %v105 = vmax.f32 %v101, 0.0
  %v106 = vmax.f32 %v102, 0.0
  %v107 = vmax.f32 %v103, 0.0
  %v108 = vmax.f32 %v104, 0.0
  %v109 = vadd.f32 %v105, 1e-06
  %v110 = vadd.f32 %v106, 1e-06
  %v111 = vadd.f32 %v107, 1e-06
  %v112 = vadd.f32 %v108, 1e-06
  %v113 = vrsqrt.pop %v109
  %v114 = vrsqrt.pop %v110
  %v115 = vrsqrt.pop %v111
  %v116 = vrsqrt.pop %v112
  %v121 = vcombine.low %v89, %v90
  %v122 = vcombine.low %v91, %v92
  %v125 = vsub.f32 %v14, %v121
  %v126 = vsub.f32 %v15, %v122
  %v131 = vcombine.low %v113, %v114
  %v132 = vcombine.low %v115, %v116
  %v135 = vmul.f32 %v125, %v131
  %v136 = vmul.f32 %v126, %v132
  %138 = vset.pattern.permute.xlu0 0
  %139 = vperm.xlu0 %138, %v16
  %v140 = vpop.permute.xlu0 %139
  %v142 = vunpack.c.l.s4 839922192
  %v143 = vunpack.c.0.s8 %v142
  %v144 = vlaneseq
  %v145 = vshrl.u32 %v144, 7
  %v146 = vsub.s32 %v143, %v145
  %v147 = vrot.slane %v140, %v146
  %v149 = vmul.f32 %v135, %v147
  %v150 = vmul.f32 %v136, %v147
  %152 = vset.pattern.permute.xlu0 0
  %153 = vperm.xlu0 %152, %v17
  %v154 = vpop.permute.xlu0 %153
  %v156 = vunpack.c.l.s4 839922192
  %v157 = vunpack.c.0.s8 %v156
  %v158 = vlaneseq
  %v159 = vshrl.u32 %v158, 7
  %v160 = vsub.s32 %v157, %v159
  %v161 = vrot.slane %v154, %v160
  %v163 = vadd.f32 %v149, %v161
  %v164 = vadd.f32 %v150, %v161
  %165 = vst [vmem:[%s3] sm:$0xff] %v163
  %166 = vst [vmem:[%s3 + $0x8] sm:$0xff] %v164
  // Predicated region
  $region14: #{_layernorm_channels_first.1} parent=0 // pred_check
    _
  $region15: #{_layernorm_channels_first.1} parent=0 // pred_check_branch
    %168 = sbr.rel (0) target = $region17
  $region16: #{_layernorm_channels_first.1} parent=0 // pred_region
    _
  $region17: #{_layernorm_channels_first.1} parent=0 // pred_fallthru
    _
  // Predicated region
  $region18: #{_layernorm_channels_first.1} parent=0 // pred_check
    _
  $region19: #{_layernorm_channels_first.1} parent=0 // pred_check_branch
    %170 = sbr.rel (0) target = $region21
  $region20: #{_layernorm_channels_first.1} parent=0 // pred_region
    _
  $region21: #{_layernorm_channels_first.1} parent=0 // pred_fallthru
    _

</llo_original>
